<compile_context>
chip_gen: v6e
topology: v6e:2x2x1
jax: 0.10.0
libtpu: 0.0.40
codegen_flags: <defaults>
</compile_context>

<pallas_src>
import jax
import jax.numpy as jnp
from jax.experimental import pallas as pl
from jax.experimental.pallas import tpu as pltpu

_TILE_B = 256   # batch tile: MXU-friendly on v6e/v7x (still fine on v5e)
_LANE = 128


def _round_up(n, m):
    return ((n + m - 1) // m) * m


def _pad_to(a, shape):
    return jnp.pad(a, [(0, s - d) for d, s in zip(a.shape, shape)])


def _actor_kernel(x_ref, w1_ref, b1_ref, w2_ref, b2_ref, w3_ref, b3_ref, o_ref):
    f32 = jnp.float32
    x = x_ref[...]                                   # (TB, n_obs) f32

    # ---- Layer 1: Linear(n_obs, 400) + ReLU --------------------------------
    # K = n_obs is tiny (3): broadcast-FMA on the VPU instead of a 128-padded
    # MXU matmul (avoids inflating w1 ~55x with obs-dim padding).
    w1 = w1_ref[...]                                 # (n_obs, H1p) f32
    h1 = b1_ref[...]                                 # (1, H1p) -> broadcasts
    for i in range(w1.shape[0]):                     # static, tiny trip count
        h1 = h1 + x[:, i:i + 1] * w1[i:i + 1, :]
    h1 = jnp.maximum(h1, 0.0)                        # (TB, H1p)

    # ---- Layer 2: Linear(400, 300) + ReLU (the only big matmul) ------------
    # bf16 operands, f32 accumulate on the MXU; K/N were 128-padded once at
    # parameter-prep time so the contraction is fully aligned.
    h2 = jnp.dot(h1.astype(w2_ref.dtype), w2_ref[...],
                 preferred_element_type=f32)
    h2 = jnp.maximum(h2 + b2_ref[...], 0.0)          # (TB, H2p)

    # ---- Layer 3: Linear(300, n_actions) + Tanh -----------------------------
    # n_actions is tiny (1): per-action lane reduction (XLU) instead of a
    # (384, 128)-padded MXU matmul.
    w3 = w3_ref[...]                                 # (n_act, H2p) f32
    cols = []
    for j in range(w3.shape[0]):                     # static, tiny trip count
        c = jnp.sum(h2 * w3[j:j + 1, :], axis=-1, keepdims=True)
        cols.append(c + b3_ref[:, j:j + 1])
    out = cols[0] if len(cols) == 1 else jnp.concatenate(cols, axis=-1)
    o_ref[...] = jnp.tanh(out).astype(o_ref.dtype)   # tanh -> EUP slot


def prepare_params(params, *, w2_dtype=jnp.bfloat16):
    """One-time parameter preparation (call once, reuse every forward step).

    Transposes PyTorch-convention Linear weights to (in, out), zero-pads the
    hidden dims to multiples of 128 (exact through ReLU / zero weights), and
    casts the single large weight to bf16.
    """
    w1, b1 = params["w1"], params["b1"]      # (400, n_obs), (400,)
    w2, b2 = params["w2"], params["b2"]      # (300, 400),   (300,)
    w3, b3 = params["w3"], params["b3"]      # (n_act, 300), (n_act,)
    h1_dim, n_obs = w1.shape
    h2_dim = w2.shape[0]
    n_act = w3.shape[0]
    H1p = _round_up(h1_dim, _LANE)           # 400 -> 512
    H2p = _round_up(h2_dim, _LANE)           # 300 -> 384

    w1p = _pad_to(w1.T.astype(jnp.float32), (n_obs, H1p))           # (3, 512)
    b1p = _pad_to(b1.astype(jnp.float32)[None, :], (1, H1p))
    w2p = _pad_to(w2.T.astype(jnp.float32), (H1p, H2p)).astype(w2_dtype)
    b2p = _pad_to(b2.astype(jnp.float32)[None, :], (1, H2p))
    w3p = _pad_to(w3.astype(jnp.float32), (n_act, H2p))             # (1, 384)
    b3p = b3.astype(jnp.float32)[None, :]                           # (1, n_act)
    return (w1p, b1p, w2p, b2p, w3p, b3p)


@jax.jit
def ddpg_actor_forward(x, prepped):
    """x: (B, n_observation) float32. prepped: output of prepare_params()."""
    w1p, b1p, w2p, b2p, w3p, b3p = prepped
    B, n_obs = x.shape
    n_act = w3p.shape[0]
    H1p, H2p = w2p.shape

    Bp = _round_up(max(B, 8), 8)
    tile_b = min(Bp, _TILE_B)
    Bp = _round_up(Bp, tile_b)               # exact grid division
    grid = (Bp // tile_b,)

    xp = _pad_to(x.astype(jnp.float32), (Bp, n_obs))   # only x padded per call

    def _const(a):                            # full-array block, resident in VMEM
        return pl.BlockSpec(a.shape, lambda i: (0, 0))

    in_bytes = sum(a.size * a.dtype.itemsize
                   for a in (xp, w1p, b1p, w2p, b2p, w3p, b3p))
    cost = pl.CostEstimate(
        flops=2 * Bp * (n_obs * H1p + H1p * H2p + H2p * n_act),
        transcendentals=Bp * n_act,
        bytes_accessed=in_bytes + Bp * n_act * 4,
    )

    out = pl.pallas_call(
        _actor_kernel,
        out_shape=jax.ShapeDtypeStruct((Bp, n_act), jnp.float32),
        grid=grid,
        in_specs=[
            pl.BlockSpec((tile_b, n_obs), lambda i: (i, 0)),   # x: tiled over batch
            _const(w1p), _const(b1p),                          # weights: loaded once
            _const(w2p), _const(b2p),
            _const(w3p), _const(b3p),
        ],
        out_specs=pl.BlockSpec((tile_b, n_act), lambda i: (i, 0)),
        compiler_params=pltpu.CompilerParams(
            dimension_semantics=("parallel",)),   # v7x: batch tiles across 2 TCs
        cost_estimate=cost,
    )(xp, w1p, b1p, w2p, b2p, w3p, b3p)

    return out[:B, :]


def init_params(key, n_observation, n_actions):
    """Deterministic init mimicking PyTorch nn.Linear default (U(-k, k), k=1/sqrt(fan_in))."""
    dims = [(400, n_observation), (300, 400), (n_actions, 300)]
    params = {}
    for i, (fan_out, fan_in) in enumerate(dims, start=1):
        key, kw, kb = jax.random.split(key, 3)
        bound = 1.0 / jnp.sqrt(jnp.float32(fan_in))
        params[f"w{i}"] = jax.random.uniform(
            kw, (fan_out, fan_in), jnp.float32, -bound, bound)
        params[f"b{i}"] = jax.random.uniform(
            kb, (fan_out,), jnp.float32, -bound, bound)
    return params


def _reference_forward(x, params):
    h = jnp.maximum(x @ params["w1"].T + params["b1"], 0.0)
    h = jnp.maximum(h @ params["w2"].T + params["b2"], 0.0)
    return jnp.tanh(h @ params["w3"].T + params["b3"])


if __name__ == "__main__":
    n_observation = 3   # Pendulum-v1 observation dim
    n_actions = 1       # Pendulum-v1 action dim
    batch = 2

    key = jax.random.PRNGKey(0)
    key, kx, kx2 = jax.random.split(key, 3)
    params = init_params(key, n_observation, n_actions)
    prepped = prepare_params(params)      # one-time prep; reused every call

    # Small inference-sized batch (grid degenerates to a single step).
    x = jax.random.normal(kx, (batch, n_observation), jnp.float32)
    out = jax.block_until_ready(ddpg_actor_forward(x, prepped))
    ref = _reference_forward(x, params)
    assert out.shape == (batch, n_actions), out.shape
    # Layer-2 weights are bf16 (f32 accumulate) -> relaxed tolerance vs f32 ref.
    assert jnp.allclose(out, ref, atol=2e-2, rtol=2e-2), (out, ref)

    # Non-tile-aligned batch exercising the padded batch grid path.
    x2 = jax.random.normal(kx2, (300, n_observation), jnp.float32)
    out2 = jax.block_until_ready(ddpg_actor_forward(x2, prepped))
    ref2 = _reference_forward(x2, params)
    assert out2.shape == (300, n_actions), out2.shape
    assert jnp.allclose(out2, ref2, atol=2e-2, rtol=2e-2)

    print("KERNEL_OK")
</pallas_src>

<mosaic_0001>
module attributes {stable_mosaic.version = 11 : i64} {
  func.func @_actor_kernel(%arg0: i32, %arg1: memref<8x3xf32, #tpu.memory_space<vmem>>, %arg2: memref<3x512xf32, #tpu.memory_space<vmem>>, %arg3: memref<1x512xf32, #tpu.memory_space<vmem>>, %arg4: memref<512x384xbf16, #tpu.memory_space<vmem>>, %arg5: memref<1x384xf32, #tpu.memory_space<vmem>>, %arg6: memref<1x384xf32, #tpu.memory_space<vmem>>, %arg7: memref<1x1xf32, #tpu.memory_space<vmem>>, %arg8: memref<8x1xf32, #tpu.memory_space<vmem>>) attributes {dimension_semantics = [#tpu.dimension_semantics<parallel>], iteration_bounds = array<i64: 1>, scalar_prefetch = 0 : i64, scratch_operands = 0 : i64, tpu.core_type = #tpu.core_type<tc>, window_params = [{transform_indices = @transform_0, window_bounds = array<i64: 8, 3>}, {pipeline_mode = #tpu.pipeline_mode<synchronous>, transform_indices = @transform_1, window_bounds = array<i64: 3, 512>}, {pipeline_mode = #tpu.pipeline_mode<synchronous>, transform_indices = @transform_2, window_bounds = array<i64: 1, 512>}, {pipeline_mode = #tpu.pipeline_mode<synchronous>, transform_indices = @transform_3, window_bounds = array<i64: 512, 384>}, {pipeline_mode = #tpu.pipeline_mode<synchronous>, transform_indices = @transform_4, window_bounds = array<i64: 1, 384>}, {pipeline_mode = #tpu.pipeline_mode<synchronous>, transform_indices = @transform_5, window_bounds = array<i64: 1, 384>}, {pipeline_mode = #tpu.pipeline_mode<synchronous>, transform_indices = @transform_6, window_bounds = array<i64: 1, 1>}, {transform_indices = @transform_7, window_bounds = array<i64: 8, 1>}]} {
    %c0 = arith.constant 0 : index
    %c0_0 = arith.constant 0 : index
    %0 = vector.load %arg1[%c0, %c0_0] : memref<8x3xf32, #tpu.memory_space<vmem>>, vector<8x3xf32>
    %c0_1 = arith.constant 0 : index
    %c0_2 = arith.constant 0 : index
    %1 = vector.load %arg2[%c0_1, %c0_2] : memref<3x512xf32, #tpu.memory_space<vmem>>, vector<3x512xf32>
    %c0_3 = arith.constant 0 : index
    %c0_4 = arith.constant 0 : index
    %2 = vector.load %arg3[%c0_3, %c0_4] : memref<1x512xf32, #tpu.memory_space<vmem>>, vector<1x512xf32>
    %3 = vector.extract_strided_slice %0 {offsets = [0, 0], sizes = [8, 1], strides = [1, 1]} : vector<8x3xf32> to vector<8x1xf32>
    %4 = vector.extract_strided_slice %1 {offsets = [0, 0], sizes = [1, 512], strides = [1, 1]} : vector<3x512xf32> to vector<1x512xf32>
    %5 = vector.broadcast %3 : vector<8x1xf32> to vector<8x512xf32>
    %6 = vector.broadcast %4 : vector<1x512xf32> to vector<8x512xf32>
    %7 = arith.mulf %5, %6 : vector<8x512xf32>
    %8 = vector.broadcast %2 : vector<1x512xf32> to vector<8x512xf32>
    %9 = arith.addf %8, %7 : vector<8x512xf32>
    %10 = vector.extract_strided_slice %0 {offsets = [0, 1], sizes = [8, 1], strides = [1, 1]} : vector<8x3xf32> to vector<8x1xf32>
    %11 = vector.extract_strided_slice %1 {offsets = [1, 0], sizes = [1, 512], strides = [1, 1]} : vector<3x512xf32> to vector<1x512xf32>
    %12 = vector.broadcast %10 : vector<8x1xf32> to vector<8x512xf32>
    %13 = vector.broadcast %11 : vector<1x512xf32> to vector<8x512xf32>
    %14 = arith.mulf %12, %13 : vector<8x512xf32>
    %15 = arith.addf %9, %14 : vector<8x512xf32>
    %16 = vector.extract_strided_slice %0 {offsets = [0, 2], sizes = [8, 1], strides = [1, 1]} : vector<8x3xf32> to vector<8x1xf32>
    %17 = vector.extract_strided_slice %1 {offsets = [2, 0], sizes = [1, 512], strides = [1, 1]} : vector<3x512xf32> to vector<1x512xf32>
    %18 = vector.broadcast %16 : vector<8x1xf32> to vector<8x512xf32>
    %19 = vector.broadcast %17 : vector<1x512xf32> to vector<8x512xf32>
    %20 = arith.mulf %18, %19 : vector<8x512xf32>
    %21 = arith.addf %15, %20 : vector<8x512xf32>
    %cst = arith.constant 0.000000e+00 : f32
    %22 = vector.broadcast %cst : f32 to vector<8x512xf32>
    %23 = arith.maximumf %21, %22 : vector<8x512xf32>
    %24 = arith.truncf %23 : vector<8x512xf32> to vector<8x512xbf16>
    %c0_5 = arith.constant 0 : index
    %c0_6 = arith.constant 0 : index
    %25 = vector.load %arg4[%c0_5, %c0_6] : memref<512x384xbf16, #tpu.memory_space<vmem>>, vector<512x384xbf16>
    %cst_7 = arith.constant dense<0.000000e+00> : vector<8x384xf32>
    %26 = tpu.matmul %24, %25, %cst_7 {dimension_numbers = #tpu.dot_dimension_numbers<[1], [0], [0], [1], [0, 0, 1, 1], [], []>} : vector<8x512xbf16>, vector<512x384xbf16>, vector<8x384xf32> -> vector<8x384xf32>
    %c0_8 = arith.constant 0 : index
    %c0_9 = arith.constant 0 : index
    %27 = vector.load %arg5[%c0_8, %c0_9] : memref<1x384xf32, #tpu.memory_space<vmem>>, vector<1x384xf32>
    %28 = vector.broadcast %27 : vector<1x384xf32> to vector<8x384xf32>
    %29 = arith.addf %26, %28 : vector<8x384xf32>
    %cst_10 = arith.constant 0.000000e+00 : f32
    %30 = vector.broadcast %cst_10 : f32 to vector<8x384xf32>
    %31 = arith.maximumf %29, %30 : vector<8x384xf32>
    %c0_11 = arith.constant 0 : index
    %c0_12 = arith.constant 0 : index
    %32 = vector.load %arg6[%c0_11, %c0_12] : memref<1x384xf32, #tpu.memory_space<vmem>>, vector<1x384xf32>
    %33 = vector.broadcast %32 : vector<1x384xf32> to vector<8x384xf32>
    %34 = arith.mulf %31, %33 : vector<8x384xf32>
    %cst_13 = arith.constant dense<0.000000e+00> : vector<8xf32>
    %35 = vector.multi_reduction <add>, %34, %cst_13 [1] : vector<8x384xf32> to vector<8xf32>
    %36 = vector.shape_cast %35 : vector<8xf32> to vector<8x1xf32>
    %c0_14 = arith.constant 0 : index
    %c0_15 = arith.constant 0 : index
    %37 = vector.load %arg7[%c0_14, %c0_15] : memref<1x1xf32, #tpu.memory_space<vmem>>, vector<1x1xf32>
    %38 = vector.broadcast %37 : vector<1x1xf32> to vector<8x1xf32>
    %39 = arith.addf %36, %38 : vector<8x1xf32>
    %40 = math.tanh %39 : vector<8x1xf32>
    %c0_16 = arith.constant 0 : index
    %c0_17 = arith.constant 0 : index
    %41 = vector.load %arg8[%c0_16, %c0_17] : memref<8x1xf32, #tpu.memory_space<vmem>>, vector<8x1xf32>
    tpu.vector_store %arg8[%c0_16, %c0_17], %40 {strides = array<i32>} : memref<8x1xf32, #tpu.memory_space<vmem>>, vector<8x1xf32>,
    return
  }
  func.func @transform_0(%arg0: i32) -> (i32, i32) {
    %c0_i32 = arith.constant 0 : i32
    %c0_i32_0 = arith.constant 0 : i32
    return %arg0, %c0_i32 : i32, i32
  }
  func.func @transform_1(%arg0: i32) -> (i32, i32) {
    %c0_i32 = arith.constant 0 : i32
    %c0_i32_0 = arith.constant 0 : i32
    %c0_i32_1 = arith.constant 0 : i32
    return %c0_i32, %c0_i32_0 : i32, i32
  }
  func.func @transform_2(%arg0: i32) -> (i32, i32) {
    %c0_i32 = arith.constant 0 : i32
    %c0_i32_0 = arith.constant 0 : i32
    %c0_i32_1 = arith.constant 0 : i32
    return %c0_i32, %c0_i32_0 : i32, i32
  }
  func.func @transform_3(%arg0: i32) -> (i32, i32) {
    %c0_i32 = arith.constant 0 : i32
    %c0_i32_0 = arith.constant 0 : i32
    %c0_i32_1 = arith.constant 0 : i32
    return %c0_i32, %c0_i32_0 : i32, i32
  }
  func.func @transform_4(%arg0: i32) -> (i32, i32) {
    %c0_i32 = arith.constant 0 : i32
    %c0_i32_0 = arith.constant 0 : i32
    %c0_i32_1 = arith.constant 0 : i32
    return %c0_i32, %c0_i32_0 : i32, i32
  }
  func.func @transform_5(%arg0: i32) -> (i32, i32) {
    %c0_i32 = arith.constant 0 : i32
    %c0_i32_0 = arith.constant 0 : i32
    %c0_i32_1 = arith.constant 0 : i32
    return %c0_i32, %c0_i32_0 : i32, i32
  }
  func.func @transform_6(%arg0: i32) -> (i32, i32) {
    %c0_i32 = arith.constant 0 : i32
    %c0_i32_0 = arith.constant 0 : i32
    %c0_i32_1 = arith.constant 0 : i32
    return %c0_i32, %c0_i32_0 : i32, i32
  }
  func.func @transform_7(%arg0: i32) -> (i32, i32) {
    %c0_i32 = arith.constant 0 : i32
    %c0_i32_0 = arith.constant 0 : i32
    return %arg0, %c0_i32 : i32, i32
  }
}

</mosaic_0001>

<llo_original>
// kernel: ddpg_actor_forward.1
$region0: #{ddpg_actor_forward.1}
  #allocation0 [shape = 'u32[]', space=smem, size = 0x4, offset = 0x4, fixed_abs, tag = 'smem constant byte address 0x4 - core index']
  #allocation1 [shape = 'u32[144,128]{1,0:T(1,128)}', space=vmem, size = 0x12000, scoped, tag = 'internal scratch']
  #allocation2 [shape = 'f32[1,1]{1,0:T(1,128)S(1)}', space=vmem, size = 0x200, scoped, tag = 'scoped memory for ddpg_actor_forward.1']
  %s0 = inlined_call_operand.vmem [shape: f32[8,3], index: 0, kind: input, shape index: {}]
  %s1 = inlined_call_operand.hbm [shape: f32[3,512], index: 1, kind: input, shape index: {}]
  %s2 = inlined_call_operand.vmem [shape: f32[1,512], index: 2, kind: input, shape index: {}]
  %s3 = inlined_call_operand.hbm [shape: bf16[512,384], index: 3, kind: input, shape index: {}]
  %s4 = inlined_call_operand.vmem [shape: f32[1,384], index: 4, kind: input, shape index: {}]
  %s5 = inlined_call_operand.vmem [shape: f32[1,384], index: 5, kind: input, shape index: {}]
  %s6 = inlined_call_operand.<no memory space> [shape: f32[1,1], index: 6, kind: input, shape index: {}]
  %s7 = inlined_call_operand.vmem [shape: f32[8,1], index: 7, kind: output, shape index: {}]
  %s8 = sld [smem:[#allocation0]]
  $region46: #{ddpg_actor_forward.1} parent=0
    _
  %s10 = ssub.s32 1, %s8
  %s11 = scalar_select 0, %s10, %s8
  %v12 = vstv %s6
  %13 = vst [vmem:[#allocation2] sm:$0x1] %v12
  $region1: #{ddpg_actor_forward.1} parent=0
    #allocation3 [shape = 'u8[8192]{0}', space=vmem, size = 0x2000, scoped, tag = 'input window, operand 1, single buffered']
    #allocation4 [shape = 's32[1]{0}', space=sflag, size = 0x4, scoped, tag = 'scoped memory for ddpg_actor_forward.1']
    #allocation5 [shape = 'u8[393216]{0}', space=vmem, size = 0x60000, scoped, tag = 'input window, operand 3, single buffered']
    #allocation6 [shape = 's32[1]{0}', space=sflag, size = 0x4, scoped, tag = 'scoped memory for ddpg_actor_forward.1']
    %14 = vsyncpa [#allocation4], 0
    %15 = vsyncpa [#allocation6], 0
    // Predicated region
    $region2: #{ddpg_actor_forward.1} parent=1 // pred_check
      _
    $region3: #{ddpg_actor_forward.1} parent=1 // pred_check_branch
      %17 = sbr.rel (0) target = $region5
    $region4: #{ddpg_actor_forward.1} parent=1 // pred_region
      _
    $region5: #{ddpg_actor_forward.1} parent=1 // pred_fallthru
      _
    // Predicated region
    $region6: #{ddpg_actor_forward.1} parent=1 // pred_check
      _
    $region7: #{ddpg_actor_forward.1} parent=1 // pred_check_branch
      %19 = sbr.rel (0) target = $region9
    $region8: #{ddpg_actor_forward.1} parent=1 // pred_region
      %s21 = ssub.s32 256, 256
      %22 = vsyncadd [#allocation4], %s21
      %s24 = sshll.u32 [#allocation3], 4
      %s25 = int_to_ptr.vmem [resolvable:$true] %s24
      %27 = dma.hbm_to_vmem [thread:$0]  %s1, 256, %s25, [#allocation4]
    $region9: #{ddpg_actor_forward.1} parent=1 // pred_fallthru
      _
    // Predicated region
    $region10: #{ddpg_actor_forward.1} parent=1 // pred_check
      _
    $region11: #{ddpg_actor_forward.1} parent=1 // pred_check_branch
      %29 = sbr.rel (0) target = $region13
    $region12: #{ddpg_actor_forward.1} parent=1 // pred_region
      _
    $region13: #{ddpg_actor_forward.1} parent=1 // pred_fallthru
      _
    // Predicated region
    $region14: #{ddpg_actor_forward.1} parent=1 // pred_check
      _
    $region15: #{ddpg_actor_forward.1} parent=1 // pred_check_branch
      %31 = sbr.rel (0) target = $region17
    $region16: #{ddpg_actor_forward.1} parent=1 // pred_region
      %s33 = ssub.s32 12288, 12288
      %34 = vsyncadd [#allocation6], %s33
      %s35 = sshll.u32 [#allocation5], 4
      %s36 = int_to_ptr.vmem [resolvable:$true] %s35
      %41 = dma.hbm_to_vmem [thread:$0]  %s3, 12288, %s36, [#allocation6], 192, 192, 12
    $region17: #{ddpg_actor_forward.1} parent=1 // pred_fallthru
      _
    // Predicated region
    $region18: #{ddpg_actor_forward.1} parent=1 // pred_check
      _
    $region19: #{ddpg_actor_forward.1} parent=1 // pred_check_branch
      %43 = sbr.rel (0) target = $region21
    $region20: #{ddpg_actor_forward.1} parent=1 // pred_region
      _
    $region21: #{ddpg_actor_forward.1} parent=1 // pred_fallthru
      _
    // Predicated region
    $region22: #{ddpg_actor_forward.1} parent=1 // pred_check
      _
    $region23: #{ddpg_actor_forward.1} parent=1 // pred_check_branch
      %45 = sbr.rel (0) target = $region25
    $region24: #{ddpg_actor_forward.1} parent=1 // pred_region
      _
    $region25: #{ddpg_actor_forward.1} parent=1 // pred_fallthru
      _
    // Predicated region
    $region26: #{ddpg_actor_forward.1} parent=1 // pred_check
      _
    $region27: #{ddpg_actor_forward.1} parent=1 // pred_check_branch
      %47 = sbr.rel (0) target = $region29
    $region28: #{ddpg_actor_forward.1} parent=1 // pred_region
      _
    $region29: #{ddpg_actor_forward.1} parent=1 // pred_fallthru
      _
    // Predicated region
    $region30: #{ddpg_actor_forward.1} parent=1 // pred_check
      _
    $region31: #{ddpg_actor_forward.1} parent=1 // pred_check_branch
      %49 = sbr.rel (0) target = $region33
    $region32: #{ddpg_actor_forward.1} parent=1 // pred_region
      %50 = dma.done [#allocation4], 256
    $region33: #{ddpg_actor_forward.1} parent=1 // pred_fallthru
      _
    // Predicated region
    $region34: #{ddpg_actor_forward.1} parent=1 // pred_check
      _
    $region35: #{ddpg_actor_forward.1} parent=1 // pred_check_branch
      %52 = sbr.rel (0) target = $region37
    $region36: #{ddpg_actor_forward.1} parent=1 // pred_region
      %53 = dma.done [#allocation6], 12288
    $region37: #{ddpg_actor_forward.1} parent=1 // pred_fallthru
      _
    %v55 = vld [vmem:[%s0] sm:$0xff]
    %v56 = vld [vmem:[#allocation3] sm:$0x77]
    %v57 = vld [vmem:[#allocation3 + $0x8] sm:$0x77]
    %v58 = vld [vmem:[%s2] sm:$0xf]
    %60 = vset.pattern.permute.xlu0 0
    %61 = vperm.xlu0 %60, %v55
    %v62 = vpop.permute.xlu0 %61
    %v66 = vlaneseq
    %v67 = vshrl.u32 %v66, 7
    %v68 = vsub.s32 0, %v67
    %v69 = vrot.slane %v56, %v68
    %v70 = vlaneseq
    %v71 = vshrl.u32 %v70, 7
    %v72 = vsub.s32 4, %v71
    %v73 = vrot.slane %v56, %v72
    %v74 = vlaneseq
    %v75 = vshrl.u32 %v74, 7
    %v76 = vsub.s32 0, %v75
    %v77 = vrot.slane %v57, %v76
    %v78 = vlaneseq
    %v79 = vshrl.u32 %v78, 7
    %v80 = vsub.s32 4, %v79
    %v81 = vrot.slane %v57, %v80
    %v86 = vlaneseq
    %v87 = vshrl.u32 %v86, 7
    %v88 = vsub.s32 0, %v87
    %v89 = vrot.slane %v69, %v88
    %v90 = vlaneseq
    %v91 = vshrl.u32 %v90, 7
    %v92 = vsub.s32 0, %v91
    %v93 = vrot.slane %v73, %v92
    %v94 = vlaneseq
    %v95 = vshrl.u32 %v94, 7
    %v96 = vsub.s32 0, %v95
    %v97 = vrot.slane %v77, %v96
    %v98 = vlaneseq
    %v99 = vshrl.u32 %v98, 7
    %v100 = vsub.s32 0, %v99
    %v101 = vrot.slane %v81, %v100
    %v102 = vmul.f32 %v62, %v89
    %v103 = vmul.f32 %v62, %v93
    %v104 = vmul.f32 %v62, %v97
    %v105 = vmul.f32 %v62, %v101
    %v107 = vlaneseq
    %v108 = vshrl.u32 %v107, 7
    %v109 = vsub.s32 0, %v108
    %v110 = vrot.slane %v58, %v109
    %v111 = vlaneseq
    %v112 = vshrl.u32 %v111, 7
    %v113 = vsub.s32 1, %v112
    %v114 = vrot.slane %v58, %v113
    %v115 = vlaneseq
    %v116 = vshrl.u32 %v115, 7
    %v117 = vsub.s32 2, %v116
    %v118 = vrot.slane %v58, %v117
    %v119 = vlaneseq
    %v120 = vshrl.u32 %v119, 7
    %v121 = vsub.s32 3, %v120
    %v122 = vrot.slane %v58, %v121
    %v127 = vadd.f32 %v110, %v102
    %v128 = vadd.f32 %v114, %v103
    %v129 = vadd.f32 %v118, %v104
    %v130 = vadd.f32 %v122, %v105
    %131 = vset.pattern.permute.xlu0 1
    %132 = vperm.xlu0 %131, %v55
    %v133 = vpop.permute.xlu0 %132
    %v135 = vlaneseq
    %v136 = vshrl.u32 %v135, 7
    %v137 = vsub.s32 1, %v136
    %v138 = vrot.slane %v56, %v137
    %v139 = vlaneseq
    %v140 = vshrl.u32 %v139, 7
    %v141 = vsub.s32 5, %v140
    %v142 = vrot.slane %v56, %v141
    %v143 = vlaneseq
    %v144 = vshrl.u32 %v143, 7
    %v145 = vsub.s32 1, %v144
    %v146 = vrot.slane %v57, %v145
    %v147 = vlaneseq
    %v148 = vshrl.u32 %v147, 7
    %v149 = vsub.s32 5, %v148
    %v150 = vrot.slane %v57, %v149
    %v155 = vlaneseq
    %v156 = vshrl.u32 %v155, 7
    %v157 = vsub.s32 1, %v156
    %v158 = vrot.slane %v138, %v157
    %v159 = vlaneseq
    %v160 = vshrl.u32 %v159, 7
    %v161 = vsub.s32 1, %v160
    %v162 = vrot.slane %v142, %v161
    %v163 = vlaneseq
    %v164 = vshrl.u32 %v163, 7
    %v165 = vsub.s32 1, %v164
    %v166 = vrot.slane %v146, %v165
    %v167 = vlaneseq
    %v168 = vshrl.u32 %v167, 7
    %v169 = vsub.s32 1, %v168
    %v170 = vrot.slane %v150, %v169
    %v171 = vmul.f32 %v133, %v158
    %v172 = vmul.f32 %v133, %v162
    %v173 = vmul.f32 %v133, %v166
    %v174 = vmul.f32 %v133, %v170
    %v175 = vadd.f32 %v127, %v171
    %v176 = vadd.f32 %v128, %v172
    %v177 = vadd.f32 %v129, %v173
    %v178 = vadd.f32 %v130, %v174
    %179 = vset.pattern.permute.xlu0 2
    %180 = vperm.xlu0 %179, %v55
    %v181 = vpop.permute.xlu0 %180
    %v183 = vlaneseq
    %v184 = vshrl.u32 %v183, 7
    %v185 = vsub.s32 2, %v184
    %v186 = vrot.slane %v56, %v185
    %v187 = vlaneseq
    %v188 = vshrl.u32 %v187, 7
    %v189 = vsub.s32 6, %v188
    %v190 = vrot.slane %v56, %v189
    %v191 = vlaneseq
    %v192 = vshrl.u32 %v191, 7
    %v193 = vsub.s32 2, %v192
    %v194 = vrot.slane %v57, %v193
    %v195 = vlaneseq
    %v196 = vshrl.u32 %v195, 7
    %v197 = vsub.s32 6, %v196
    %v198 = vrot.slane %v57, %v197
    %v203 = vlaneseq
    %v204 = vshrl.u32 %v203, 7
    %v205 = vsub.s32 2, %v204
    %v206 = vrot.slane %v186, %v205
    %v207 = vlaneseq
    %v208 = vshrl.u32 %v207, 7
    %v209 = vsub.s32 2, %v208
    %v210 = vrot.slane %v190, %v209
    %v211 = vlaneseq
    %v212 = vshrl.u32 %v211, 7
    %v213 = vsub.s32 2, %v212
    %v214 = vrot.slane %v194, %v213
    %v215 = vlaneseq
    %v216 = vshrl.u32 %v215, 7
    %v217 = vsub.s32 2, %v216
    %v218 = vrot.slane %v198, %v217
    %v219 = vmul.f32 %v181, %v206
    %v220 = vmul.f32 %v181, %v210
    %v221 = vmul.f32 %v181, %v214
    %v222 = vmul.f32 %v181, %v218
    %v223 = vadd.f32 %v175, %v219
    %v224 = vadd.f32 %v176, %v220
    %v225 = vadd.f32 %v177, %v221
    %v226 = vadd.f32 %v178, %v222
    %v227 = vmax.f32 %v223, 0.0
    %v228 = vmax.f32 %v224, 0.0
    %v229 = vmax.f32 %v225, 0.0
    %v230 = vmax.f32 %v226, 0.0
    %v231 = vpack.c.bf16 %v227, %v227
    %v232 = vpack.c.bf16 %v228, %v228
    %v233 = vpack.c.bf16 %v229, %v229
    %v234 = vpack.c.bf16 %v230, %v230
    %v235 = vld [vmem:[#allocation5] sm:$0xff]
    %v236 = vld [vmem:[#allocation5 + $0x8] sm:$0xf]
    %v237 = vld [vmem:[#allocation5 + $0xc] sm:$0xff]
    %v238 = vld [vmem:[#allocation5 + $0x14] sm:$0xf]
    %v239 = vld [vmem:[#allocation5 + $0x18] sm:$0xff]
    %v240 = vld [vmem:[#allocation5 + $0x20] sm:$0xf]
    %v241 = vld [vmem:[#allocation5 + $0x24] sm:$0xff]
    %v242 = vld [vmem:[#allocation5 + $0x2c] sm:$0xf]
    %v243 = vld [vmem:[#allocation5 + $0x30] sm:$0xff]
    %v244 = vld [vmem:[#allocation5 + $0x38] sm:$0xf]
    %v245 = vld [vmem:[#allocation5 + $0x3c] sm:$0xff]
    %v246 = vld [vmem:[#allocation5 + $0x44] sm:$0xf]
    %v247 = vld [vmem:[#allocation5 + $0x48] sm:$0xff]
    %v248 = vld [vmem:[#allocation5 + $0x50] sm:$0xf]
    %v249 = vld [vmem:[#allocation5 + $0x54] sm:$0xff]
    %v250 = vld [vmem:[#allocation5 + $0x5c] sm:$0xf]
    %v251 = vld [vmem:[#allocation5 + $0x60] sm:$0xff]
    %v252 = vld [vmem:[#allocation5 + $0x68] sm:$0xf]
    %v253 = vld [vmem:[#allocation5 + $0x6c] sm:$0xff]
    %v254 = vld [vmem:[#allocation5 + $0x74] sm:$0xf]
    %v255 = vld [vmem:[#allocation5 + $0x78] sm:$0xff]
    %v256 = vld [vmem:[#allocation5 + $0x80] sm:$0xf]
    %v257 = vld [vmem:[#allocation5 + $0x84] sm:$0xff]
    %v258 = vld [vmem:[#allocation5 + $0x8c] sm:$0xf]
    %v259 = vld [vmem:[#allocation5 + $0x90] sm:$0xff]
    %v260 = vld [vmem:[#allocation5 + $0x98] sm:$0xf]
    %v261 = vld [vmem:[#allocation5 + $0x9c] sm:$0xff]
    %v262 = vld [vmem:[#allocation5 + $0xa4] sm:$0xf]
    %v263 = vld [vmem:[#allocation5 + $0xa8] sm:$0xff]
    %v264 = vld [vmem:[#allocation5 + $0xb0] sm:$0xf]
    %v265 = vld [vmem:[#allocation5 + $0xb4] sm:$0xff]
    %v266 = vld [vmem:[#allocation5 + $0xbc] sm:$0xf]
    %v267 = vld [vmem:[#allocation5 + $0xc0] sm:$0xff]
    %v268 = vld [vmem:[#allocation5 + $0xc8] sm:$0xf]
    %v269 = vld [vmem:[#allocation5 + $0xcc] sm:$0xff]
    %v270 = vld [vmem:[#allocation5 + $0xd4] sm:$0xf]
    %v271 = vld [vmem:[#allocation5 + $0xd8] sm:$0xff]
    %v272 = vld [vmem:[#allocation5 + $0xe0] sm:$0xf]
    %v273 = vld [vmem:[#allocation5 + $0xe4] sm:$0xff]
    %v274 = vld [vmem:[#allocation5 + $0xec] sm:$0xf]
    %v275 = vld [vmem:[#allocation5 + $0xf0] sm:$0xff]
    %v276 = vld [vmem:[#allocation5 + $0xf8] sm:$0xf]
    %v277 = vld [vmem:[#allocation5 + $0xfc] sm:$0xff]
    %v278 = vld [vmem:[#allocation5 + $0x104] sm:$0xf]
    %v279 = vld [vmem:[#allocation5 + $0x108] sm:$0xff]
    %v280 = vld [vmem:[#allocation5 + $0x110] sm:$0xf]
    %v281 = vld [vmem:[#allocation5 + $0x114] sm:$0xff]
    %v282 = vld [vmem:[#allocation5 + $0x11c] sm:$0xf]
    %v283 = vld [vmem:[#allocation5 + $0x120] sm:$0xff]
    %v284 = vld [vmem:[#allocation5 + $0x128] sm:$0xf]
    %v285 = vld [vmem:[#allocation5 + $0x12c] sm:$0xff]
    %v286 = vld [vmem:[#allocation5 + $0x134] sm:$0xf]
    %v287 = vld [vmem:[#allocation5 + $0x138] sm:$0xff]
    %v288 = vld [vmem:[#allocation5 + $0x140] sm:$0xf]
    %v289 = vld [vmem:[#allocation5 + $0x144] sm:$0xff]
    %v290 = vld [vmem:[#allocation5 + $0x14c] sm:$0xf]
    %v291 = vld [vmem:[#allocation5 + $0x150] sm:$0xff]
    %v292 = vld [vmem:[#allocation5 + $0x158] sm:$0xf]
    %v293 = vld [vmem:[#allocation5 + $0x15c] sm:$0xff]
    %v294 = vld [vmem:[#allocation5 + $0x164] sm:$0xf]
    %v295 = vld [vmem:[#allocation5 + $0x168] sm:$0xff]
    %v296 = vld [vmem:[#allocation5 + $0x170] sm:$0xf]
    %v297 = vld [vmem:[#allocation5 + $0x174] sm:$0xff]
    %v298 = vld [vmem:[#allocation5 + $0x17c] sm:$0xf]
    %v299 = vld [vmem:[#allocation5 + $0x180] sm:$0xff]
    %v300 = vld [vmem:[#allocation5 + $0x188] sm:$0xf]
    %v301 = vld [vmem:[#allocation5 + $0x18c] sm:$0xff]
    %v302 = vld [vmem:[#allocation5 + $0x194] sm:$0xf]
    %v303 = vld [vmem:[#allocation5 + $0x198] sm:$0xff]
    %v304 = vld [vmem:[#allocation5 + $0x1a0] sm:$0xf]
    %v305 = vld [vmem:[#allocation5 + $0x1a4] sm:$0xff]
    %v306 = vld [vmem:[#allocation5 + $0x1ac] sm:$0xf]
    %v307 = vld [vmem:[#allocation5 + $0x1b0] sm:$0xff]
    %v308 = vld [vmem:[#allocation5 + $0x1b8] sm:$0xf]
    %v309 = vld [vmem:[#allocation5 + $0x1bc] sm:$0xff]
    %v310 = vld [vmem:[#allocation5 + $0x1c4] sm:$0xf]
    %v311 = vld [vmem:[#allocation5 + $0x1c8] sm:$0xff]
    %v312 = vld [vmem:[#allocation5 + $0x1d0] sm:$0xf]
    %v313 = vld [vmem:[#allocation5 + $0x1d4] sm:$0xff]
    %v314 = vld [vmem:[#allocation5 + $0x1dc] sm:$0xf]
    %v315 = vld [vmem:[#allocation5 + $0x1e0] sm:$0xff]
    %v316 = vld [vmem:[#allocation5 + $0x1e8] sm:$0xf]
    %v317 = vld [vmem:[#allocation5 + $0x1ec] sm:$0xff]
    %v318 = vld [vmem:[#allocation5 + $0x1f4] sm:$0xf]
    %v319 = vld [vmem:[#allocation5 + $0x1f8] sm:$0xff]
    %v320 = vld [vmem:[#allocation5 + $0x200] sm:$0xf]
    %v321 = vld [vmem:[#allocation5 + $0x204] sm:$0xff]
    %v322 = vld [vmem:[#allocation5 + $0x20c] sm:$0xf]
    %v323 = vld [vmem:[#allocation5 + $0x210] sm:$0xff]
    %v324 = vld [vmem:[#allocation5 + $0x218] sm:$0xf]
    %v325 = vld [vmem:[#allocation5 + $0x21c] sm:$0xff]
    %v326 = vld [vmem:[#allocation5 + $0x224] sm:$0xf]
    %v327 = vld [vmem:[#allocation5 + $0x228] sm:$0xff]
    %v328 = vld [vmem:[#allocation5 + $0x230] sm:$0xf]
    %v329 = vld [vmem:[#allocation5 + $0x234] sm:$0xff]
    %v330 = vld [vmem:[#allocation5 + $0x23c] sm:$0xf]
    %v331 = vld [vmem:[#allocation5 + $0x240] sm:$0xff]
    %v332 = vld [vmem:[#allocation5 + $0x248] sm:$0xf]
    %v333 = vld [vmem:[#allocation5 + $0x24c] sm:$0xff]
    %v334 = vld [vmem:[#allocation5 + $0x254] sm:$0xf]
    %v335 = vld [vmem:[#allocation5 + $0x258] sm:$0xff]
    %v336 = vld [vmem:[#allocation5 + $0x260] sm:$0xf]
    %v337 = vld [vmem:[#allocation5 + $0x264] sm:$0xff]
    %v338 = vld [vmem:[#allocation5 + $0x26c] sm:$0xf]
    %v339 = vld [vmem:[#allocation5 + $0x270] sm:$0xff]
    %v340 = vld [vmem:[#allocation5 + $0x278] sm:$0xf]
    %v341 = vld [vmem:[#allocation5 + $0x27c] sm:$0xff]
    %v342 = vld [vmem:[#allocation5 + $0x284] sm:$0xf]
    %v343 = vld [vmem:[#allocation5 + $0x288] sm:$0xff]
    %v344 = vld [vmem:[#allocation5 + $0x290] sm:$0xf]
    %v345 = vld [vmem:[#allocation5 + $0x294] sm:$0xff]
    %v346 = vld [vmem:[#allocation5 + $0x29c] sm:$0xf]
    %v347 = vld [vmem:[#allocation5 + $0x2a0] sm:$0xff]
    %v348 = vld [vmem:[#allocation5 + $0x2a8] sm:$0xf]
    %v349 = vld [vmem:[#allocation5 + $0x2ac] sm:$0xff]
    %v350 = vld [vmem:[#allocation5 + $0x2b4] sm:$0xf]
    %v351 = vld [vmem:[#allocation5 + $0x2b8] sm:$0xff]
    %v352 = vld [vmem:[#allocation5 + $0x2c0] sm:$0xf]
    %v353 = vld [vmem:[#allocation5 + $0x2c4] sm:$0xff]
    %v354 = vld [vmem:[#allocation5 + $0x2cc] sm:$0xf]
    %v355 = vld [vmem:[#allocation5 + $0x2d0] sm:$0xff]
    %v356 = vld [vmem:[#allocation5 + $0x2d8] sm:$0xf]
    %v357 = vld [vmem:[#allocation5 + $0x2dc] sm:$0xff]
    %v358 = vld [vmem:[#allocation5 + $0x2e4] sm:$0xf]
    %v359 = vld [vmem:[#allocation5 + $0x2e8] sm:$0xff]
    %v360 = vld [vmem:[#allocation5 + $0x2f0] sm:$0xf]
    %v361 = vld [vmem:[#allocation5 + $0x2f4] sm:$0xff]
    %v362 = vld [vmem:[#allocation5 + $0x2fc] sm:$0xf]
    %v363 = vld [vmem:[%s4] sm:$0x7]
    %v365 = vlaneseq
    %v366 = vshrl.u32 %v365, 7
    %v367 = vsub.s32 0, %v366
    %v368 = vrot.slane %v363, %v367
    %v369 = vlaneseq
    %v370 = vshrl.u32 %v369, 7
    %v371 = vsub.s32 1, %v370
    %v372 = vrot.slane %v363, %v371
    %v373 = vlaneseq
    %v374 = vshrl.u32 %v373, 7
    %v375 = vsub.s32 2, %v374
    %v376 = vrot.slane %v363, %v375
    %v508 = vunpack.c.l.b16 %v235
    %v509 = vunpack.c.h.b16 %v235
    %v510 = vunpack.c.l.b16 %v236
    %v511 = vunpack.c.l.b16 %v237
    %v512 = vunpack.c.h.b16 %v237
    %v513 = vunpack.c.l.b16 %v238
    %v514 = vunpack.c.l.b16 %v239
    %v515 = vunpack.c.h.b16 %v239
    %v516 = vunpack.c.l.b16 %v240
    %v517 = vunpack.c.l.b16 %v241
    %v518 = vunpack.c.h.b16 %v241
    %v519 = vunpack.c.l.b16 %v242
    %v520 = vunpack.c.l.b16 %v243
    %v521 = vunpack.c.h.b16 %v243
    %v522 = vunpack.c.l.b16 %v244
    %v523 = vunpack.c.l.b16 %v245
    %v524 = vunpack.c.h.b16 %v245
    %v525 = vunpack.c.l.b16 %v246
    %v526 = vunpack.c.l.b16 %v247
    %v527 = vunpack.c.h.b16 %v247
    %v528 = vunpack.c.l.b16 %v248
    %v529 = vunpack.c.l.b16 %v249
    %v530 = vunpack.c.h.b16 %v249
    %v531 = vunpack.c.l.b16 %v250
    %v532 = vunpack.c.l.b16 %v251
    %v533 = vunpack.c.h.b16 %v251
    %v534 = vunpack.c.l.b16 %v252
    %v535 = vunpack.c.l.b16 %v253
    %v536 = vunpack.c.h.b16 %v253
    %v537 = vunpack.c.l.b16 %v254
    %v538 = vunpack.c.l.b16 %v255
    %v539 = vunpack.c.h.b16 %v255
    %v540 = vunpack.c.l.b16 %v256
    %v541 = vunpack.c.l.b16 %v257
    %v542 = vunpack.c.h.b16 %v257
    %v543 = vunpack.c.l.b16 %v258
    %v544 = vunpack.c.l.b16 %v259
    %v545 = vunpack.c.h.b16 %v259
    %v546 = vunpack.c.l.b16 %v260
    %v547 = vunpack.c.l.b16 %v261
    %v548 = vunpack.c.h.b16 %v261
    %v549 = vunpack.c.l.b16 %v262
    %v550 = vunpack.c.l.b16 %v263
    %v551 = vunpack.c.h.b16 %v263
    %v552 = vunpack.c.l.b16 %v264
    %v553 = vunpack.c.l.b16 %v265
    %v554 = vunpack.c.h.b16 %v265
    %v555 = vunpack.c.l.b16 %v266
    %v556 = vunpack.c.l.b16 %v267
    %v557 = vunpack.c.h.b16 %v267
    %v558 = vunpack.c.l.b16 %v268
    %v559 = vunpack.c.l.b16 %v269
    %v560 = vunpack.c.h.b16 %v269
    %v561 = vunpack.c.l.b16 %v270
    %v562 = vunpack.c.l.b16 %v271
    %v563 = vunpack.c.h.b16 %v271
    %v564 = vunpack.c.l.b16 %v272
    %v565 = vunpack.c.l.b16 %v273
    %v566 = vunpack.c.h.b16 %v273
    %v567 = vunpack.c.l.b16 %v274
    %v568 = vunpack.c.l.b16 %v275
    %v569 = vunpack.c.h.b16 %v275
    %v570 = vunpack.c.l.b16 %v276
    %v571 = vunpack.c.l.b16 %v277
    %v572 = vunpack.c.h.b16 %v277
    %v573 = vunpack.c.l.b16 %v278
    %v574 = vunpack.c.l.b16 %v279
    %v575 = vunpack.c.h.b16 %v279
    %v576 = vunpack.c.l.b16 %v280
    %v577 = vunpack.c.l.b16 %v281
    %v578 = vunpack.c.h.b16 %v281
    %v579 = vunpack.c.l.b16 %v282
    %v580 = vunpack.c.l.b16 %v283
    %v581 = vunpack.c.h.b16 %v283
    %v582 = vunpack.c.l.b16 %v284
    %v583 = vunpack.c.l.b16 %v285
    %v584 = vunpack.c.h.b16 %v285
    %v585 = vunpack.c.l.b16 %v286
    %v586 = vunpack.c.l.b16 %v287
    %v587 = vunpack.c.h.b16 %v287
    %v588 = vunpack.c.l.b16 %v288
    %v589 = vunpack.c.l.b16 %v289
    %v590 = vunpack.c.h.b16 %v289
    %v591 = vunpack.c.l.b16 %v290
    %v592 = vunpack.c.l.b16 %v291
    %v593 = vunpack.c.h.b16 %v291
    %v594 = vunpack.c.l.b16 %v292
    %v595 = vunpack.c.l.b16 %v293
    %v596 = vunpack.c.h.b16 %v293
    %v597 = vunpack.c.l.b16 %v294
    %v598 = vunpack.c.l.b16 %v295
    %v599 = vunpack.c.h.b16 %v295
    %v600 = vunpack.c.l.b16 %v296
    %v601 = vunpack.c.l.b16 %v297
    %v602 = vunpack.c.h.b16 %v297
    %v603 = vunpack.c.l.b16 %v298
    %v604 = vunpack.c.l.b16 %v299
    %v605 = vunpack.c.h.b16 %v299
    %v606 = vunpack.c.l.b16 %v300
    %v607 = vunpack.c.l.b16 %v301
    %v608 = vunpack.c.h.b16 %v301
    %v609 = vunpack.c.l.b16 %v302
    %v610 = vunpack.c.l.b16 %v303
    %v611 = vunpack.c.h.b16 %v303
    %v612 = vunpack.c.l.b16 %v304
    %v613 = vunpack.c.l.b16 %v305
    %v614 = vunpack.c.h.b16 %v305
    %v615 = vunpack.c.l.b16 %v306
    %v616 = vunpack.c.l.b16 %v307
    %v617 = vunpack.c.h.b16 %v307
    %v618 = vunpack.c.l.b16 %v308
    %v619 = vunpack.c.l.b16 %v309
    %v620 = vunpack.c.h.b16 %v309
    %v621 = vunpack.c.l.b16 %v310
    %v622 = vunpack.c.l.b16 %v311
    %v623 = vunpack.c.h.b16 %v311
    %v624 = vunpack.c.l.b16 %v312
    %v625 = vunpack.c.l.b16 %v313
    %v626 = vunpack.c.h.b16 %v313
    %v627 = vunpack.c.l.b16 %v314
    %v628 = vunpack.c.l.b16 %v315
    %v629 = vunpack.c.h.b16 %v315
    %v630 = vunpack.c.l.b16 %v316
    %v631 = vunpack.c.l.b16 %v317
    %v632 = vunpack.c.h.b16 %v317
    %v633 = vunpack.c.l.b16 %v318
    %v634 = vunpack.c.l.b16 %v319
    %v635 = vunpack.c.h.b16 %v319
    %v636 = vunpack.c.l.b16 %v320
    %v637 = vunpack.c.l.b16 %v321
    %v638 = vunpack.c.h.b16 %v321
    %v639 = vunpack.c.l.b16 %v322
    %v640 = vunpack.c.l.b16 %v323
    %v641 = vunpack.c.h.b16 %v323
    %v642 = vunpack.c.l.b16 %v324
    %v643 = vunpack.c.l.b16 %v325
    %v644 = vunpack.c.h.b16 %v325
    %v645 = vunpack.c.l.b16 %v326
    %v646 = vunpack.c.l.b16 %v327
    %v647 = vunpack.c.h.b16 %v327
    %v648 = vunpack.c.l.b16 %v328
    %v649 = vunpack.c.l.b16 %v329
    %v650 = vunpack.c.h.b16 %v329
    %v651 = vunpack.c.l.b16 %v330
    %v652 = vunpack.c.l.b16 %v331
    %v653 = vunpack.c.h.b16 %v331
    %v654 = vunpack.c.l.b16 %v332
    %v655 = vunpack.c.l.b16 %v333
    %v656 = vunpack.c.h.b16 %v333
    %v657 = vunpack.c.l.b16 %v334
    %v658 = vunpack.c.l.b16 %v335
    %v659 = vunpack.c.h.b16 %v335
    %v660 = vunpack.c.l.b16 %v336
    %v661 = vunpack.c.l.b16 %v337
    %v662 = vunpack.c.h.b16 %v337
    %v663 = vunpack.c.l.b16 %v338
    %v664 = vunpack.c.l.b16 %v339
    %v665 = vunpack.c.h.b16 %v339
    %v666 = vunpack.c.l.b16 %v340
    %v667 = vunpack.c.l.b16 %v341
    %v668 = vunpack.c.h.b16 %v341
    %v669 = vunpack.c.l.b16 %v342
    %v670 = vunpack.c.l.b16 %v343
    %v671 = vunpack.c.h.b16 %v343
    %v672 = vunpack.c.l.b16 %v344
    %v673 = vunpack.c.l.b16 %v345
    %v674 = vunpack.c.h.b16 %v345
    %v675 = vunpack.c.l.b16 %v346
    %v676 = vunpack.c.l.b16 %v347
    %v677 = vunpack.c.h.b16 %v347
    %v678 = vunpack.c.l.b16 %v348
    %v679 = vunpack.c.l.b16 %v349
    %v680 = vunpack.c.h.b16 %v349
    %v681 = vunpack.c.l.b16 %v350
    %v682 = vunpack.c.l.b16 %v351
    %v683 = vunpack.c.h.b16 %v351
    %v684 = vunpack.c.l.b16 %v352
    %v685 = vunpack.c.l.b16 %v353
    %v686 = vunpack.c.h.b16 %v353
    %v687 = vunpack.c.l.b16 %v354
    %v688 = vunpack.c.l.b16 %v355
    %v689 = vunpack.c.h.b16 %v355
    %v690 = vunpack.c.l.b16 %v356
    %v691 = vunpack.c.l.b16 %v357
    %v692 = vunpack.c.h.b16 %v357
    %v693 = vunpack.c.l.b16 %v358
    %v694 = vunpack.c.l.b16 %v359
    %v695 = vunpack.c.h.b16 %v359
    %v696 = vunpack.c.l.b16 %v360
    %v697 = vunpack.c.l.b16 %v361
    %v698 = vunpack.c.h.b16 %v361
    %v699 = vunpack.c.l.b16 %v362
    %v700 = vpack.c.b16 %v511, %v508
    %v701 = vpack.c.b16 %v512, %v509
    %v702 = vpack.c.b16 %v513, %v510
    %v703 = vpack.c.b16 %v517, %v514
    %v704 = vpack.c.b16 %v518, %v515
    %v705 = vpack.c.b16 %v519, %v516
    %v706 = vpack.c.b16 %v523, %v520
    %v707 = vpack.c.b16 %v524, %v521
    %v708 = vpack.c.b16 %v525, %v522
    %v709 = vpack.c.b16 %v529, %v526
    %v710 = vpack.c.b16 %v530, %v527
    %v711 = vpack.c.b16 %v531, %v528
    %v712 = vpack.c.b16 %v535, %v532
    %v713 = vpack.c.b16 %v536, %v533
    %v714 = vpack.c.b16 %v537, %v534
    %v715 = vpack.c.b16 %v541, %v538
    %v716 = vpack.c.b16 %v542, %v539
    %v717 = vpack.c.b16 %v543, %v540
    %v718 = vpack.c.b16 %v547, %v544
    %v719 = vpack.c.b16 %v548, %v545
    %v720 = vpack.c.b16 %v549, %v546
    %v721 = vpack.c.b16 %v553, %v550
    %v722 = vpack.c.b16 %v554, %v551
    %v723 = vpack.c.b16 %v555, %v552
    %v724 = vpack.c.b16 %v559, %v556
    %v725 = vpack.c.b16 %v560, %v557
    %v726 = vpack.c.b16 %v561, %v558
    %v727 = vpack.c.b16 %v565, %v562
    %v728 = vpack.c.b16 %v566, %v563
    %v729 = vpack.c.b16 %v567, %v564
    %v730 = vpack.c.b16 %v571, %v568
    %v731 = vpack.c.b16 %v572, %v569
    %v732 = vpack.c.b16 %v573, %v570
    %v733 = vpack.c.b16 %v577, %v574
    %v734 = vpack.c.b16 %v578, %v575
    %v735 = vpack.c.b16 %v579, %v576
    %v736 = vpack.c.b16 %v583, %v580
    %v737 = vpack.c.b16 %v584, %v581
    %v738 = vpack.c.b16 %v585, %v582
    %v739 = vpack.c.b16 %v589, %v586
    %v740 = vpack.c.b16 %v590, %v587
    %v741 = vpack.c.b16 %v591, %v588
    %v742 = vpack.c.b16 %v595, %v592
    %v743 = vpack.c.b16 %v596, %v593
    %v744 = vpack.c.b16 %v597, %v594
    %v745 = vpack.c.b16 %v601, %v598
    %v746 = vpack.c.b16 %v602, %v599
    %v747 = vpack.c.b16 %v603, %v600
    %v748 = vpack.c.b16 %v607, %v604
    %v749 = vpack.c.b16 %v608, %v605
    %v750 = vpack.c.b16 %v609, %v606
    %v751 = vpack.c.b16 %v613, %v610
    %v752 = vpack.c.b16 %v614, %v611
    %v753 = vpack.c.b16 %v615, %v612
    %v754 = vpack.c.b16 %v619, %v616
    %v755 = vpack.c.b16 %v620, %v617
    %v756 = vpack.c.b16 %v621, %v618
    %v757 = vpack.c.b16 %v625, %v622
    %v758 = vpack.c.b16 %v626, %v623
    %v759 = vpack.c.b16 %v627, %v624
    %v760 = vpack.c.b16 %v631, %v628
    %v761 = vpack.c.b16 %v632, %v629
    %v762 = vpack.c.b16 %v633, %v630
    %v763 = vpack.c.b16 %v637, %v634
    %v764 = vpack.c.b16 %v638, %v635
    %v765 = vpack.c.b16 %v639, %v636
    %v766 = vpack.c.b16 %v643, %v640
    %v767 = vpack.c.b16 %v644, %v641
    %v768 = vpack.c.b16 %v645, %v642
    %v769 = vpack.c.b16 %v649, %v646
    %v770 = vpack.c.b16 %v650, %v647
    %v771 = vpack.c.b16 %v651, %v648
    %v772 = vpack.c.b16 %v655, %v652
    %v773 = vpack.c.b16 %v656, %v653
    %v774 = vpack.c.b16 %v657, %v654
    %v775 = vpack.c.b16 %v661, %v658
    %v776 = vpack.c.b16 %v662, %v659
    %v777 = vpack.c.b16 %v663, %v660
    %v778 = vpack.c.b16 %v667, %v664
    %v779 = vpack.c.b16 %v668, %v665
    %v780 = vpack.c.b16 %v669, %v666
    %v781 = vpack.c.b16 %v673, %v670
    %v782 = vpack.c.b16 %v674, %v671
    %v783 = vpack.c.b16 %v675, %v672
    %v784 = vpack.c.b16 %v679, %v676
    %v785 = vpack.c.b16 %v680, %v677
    %v786 = vpack.c.b16 %v681, %v678
    %v787 = vpack.c.b16 %v685, %v682
    %v788 = vpack.c.b16 %v686, %v683
    %v789 = vpack.c.b16 %v687, %v684
    %v790 = vpack.c.b16 %v691, %v688
    %v791 = vpack.c.b16 %v692, %v689
    %v792 = vpack.c.b16 %v693, %v690
    %v793 = vpack.c.b16 %v697, %v694
    %v794 = vpack.c.b16 %v698, %v695
    %v795 = vpack.c.b16 %v699, %v696
    %892 = vmatprep.subr.bf16.mxu0 %v722
    %893 = vmatpush1.bf16.msra.mxu0 %v721
    %894 = vmatprep.subr.bf16.mxu0 %v719
    %895 = vmatpush1.bf16.msra.mxu0 %v718
    %896 = vmatprep.subr.bf16.mxu0 %v716
    %897 = vmatpush1.bf16.msra.mxu0 %v715
    %898 = vmatprep.subr.bf16.mxu0 %v713
    %899 = vmatpush1.bf16.msra.mxu0 %v712
    %900 = vmatprep.subr.bf16.mxu0 %v710
    %901 = vmatpush1.bf16.msra.mxu0 %v709
    %902 = vmatprep.subr.bf16.mxu0 %v707
    %903 = vmatpush1.bf16.msra.mxu0 %v706
    %904 = vmatprep.subr.bf16.mxu0 %v704
    %905 = vmatpush1.bf16.msra.mxu0 %v703
    %906 = vmatprep.subr.bf16.mxu0 %v701
    %907 = vmatpush1.bf16.msra.mxu0 %v700
    %908 = vmatprep.subr.bf16.mxu0 %v746
    %909 = vmatpush2.bf16.msra.mxu0 %v745
    %910 = vmatprep.subr.bf16.mxu0 %v743
    %911 = vmatpush2.bf16.msra.mxu0 %v742
    %912 = vmatprep.subr.bf16.mxu0 %v740
    %913 = vmatpush2.bf16.msra.mxu0 %v739
    %914 = vmatprep.subr.bf16.mxu0 %v737
    %915 = vmatpush2.bf16.msra.mxu0 %v736
    %916 = vmatprep.subr.bf16.mxu0 %v734
    %917 = vmatpush2.bf16.msra.mxu0 %v733
    %918 = vmatprep.subr.bf16.mxu0 %v731
    %919 = vmatpush2.bf16.msra.mxu0 %v730
    %920 = vmatprep.subr.bf16.mxu0 %v728
    %921 = vmatpush2.bf16.msra.mxu0 %v727
    %922 = vmatprep.subr.bf16.mxu0 %v725
    %923 = vmatpush2.bf16.msra.mxu0 %v724
    %924 = vmatprep.mubr.bf16.mxu0 %v232
    %925 = vmatmul.mubr.bf16.gmra.mxu0 %v231
    %v926 = vpop.f32.mrf.mxu0
    %v927 = vadd.f32 %v368, %v926
    %v928 = vpop.f32.mrf.mxu0
    %v929 = vadd.f32 %v372, %v928
    %v930 = vpop.f32.mrf.mxu0
    %v931 = vpop.f32.mrf.mxu0
    %932 = vdwg.mxu0
    %933 = vmatprep.subr.bf16.mxu0 %v770
    %934 = vmatpush1.bf16.msra.mxu0 %v769
    %935 = vmatprep.subr.bf16.mxu0 %v767
    %936 = vmatpush1.bf16.msra.mxu0 %v766
    %937 = vmatprep.subr.bf16.mxu0 %v764
    %938 = vmatpush1.bf16.msra.mxu0 %v763
    %939 = vmatprep.subr.bf16.mxu0 %v761
    %940 = vmatpush1.bf16.msra.mxu0 %v760
    %941 = vmatprep.subr.bf16.mxu0 %v758
    %942 = vmatpush1.bf16.msra.mxu0 %v757
    %943 = vmatprep.subr.bf16.mxu0 %v755
    %944 = vmatpush1.bf16.msra.mxu0 %v754
    %945 = vmatprep.subr.bf16.mxu0 %v752
    %946 = vmatpush1.bf16.msra.mxu0 %v751
    %947 = vmatprep.subr.bf16.mxu0 %v749
    %948 = vmatpush1.bf16.msra.mxu0 %v748
    %949 = vmatprep.subr.bf16.mxu0 %v794
    %950 = vmatpush2.bf16.msra.mxu0 %v793
    %951 = vmatprep.subr.bf16.mxu0 %v791
    %952 = vmatpush2.bf16.msra.mxu0 %v790
    %953 = vmatprep.subr.bf16.mxu0 %v788
    %954 = vmatpush2.bf16.msra.mxu0 %v787
    %955 = vmatprep.subr.bf16.mxu0 %v785
    %956 = vmatpush2.bf16.msra.mxu0 %v784
    %957 = vmatprep.subr.bf16.mxu0 %v782
    %958 = vmatpush2.bf16.msra.mxu0 %v781
    %959 = vmatprep.subr.bf16.mxu0 %v779
    %960 = vmatpush2.bf16.msra.mxu0 %v778
    %961 = vmatprep.subr.bf16.mxu0 %v776
    %962 = vmatpush2.bf16.msra.mxu0 %v775
    %963 = vmatprep.subr.bf16.mxu0 %v773
    %964 = vmatpush2.bf16.msra.mxu0 %v772
    %965 = vmatprep.mubr.bf16.mxu0 %v234
    %966 = vmatmul.mubr.bf16.gmra.mxu0 %v233
    %v967 = vpop.f32.mrf.mxu0
    %v968 = vadd.f32 %v927, %v967
    %v969 = vpop.f32.mrf.mxu0
    %v970 = vadd.f32 %v929, %v969
    %v971 = vpop.f32.mrf.mxu0
    %v972 = vpop.f32.mrf.mxu0
    %973 = vdwg.mxu0
    %974 = vmatprep.subr.bf16.mxu0 0
    %975 = vmatpush1.bf16.msra.mxu0 %v723
    %976 = vmatprep.subr.bf16.mxu0 0
    %977 = vmatpush1.bf16.msra.mxu0 %v720
    %978 = vmatprep.subr.bf16.mxu0 0
    %979 = vmatpush1.bf16.msra.mxu0 %v717
    %980 = vmatprep.subr.bf16.mxu0 0
    %981 = vmatpush1.bf16.msra.mxu0 %v714
    %982 = vmatprep.subr.bf16.mxu0 0
    %983 = vmatpush1.bf16.msra.mxu0 %v711
    %984 = vmatprep.subr.bf16.mxu0 0
    %985 = vmatpush1.bf16.msra.mxu0 %v708
    %986 = vmatprep.subr.bf16.mxu0 0
    %987 = vmatpush1.bf16.msra.mxu0 %v705
    %988 = vmatprep.subr.bf16.mxu0 0
    %989 = vmatpush1.bf16.msra.mxu0 %v702
    %990 = vmatprep.subr.bf16.mxu0 0
    %991 = vmatpush2.bf16.msra.mxu0 %v747
    %992 = vmatprep.subr.bf16.mxu0 0
    %993 = vmatpush2.bf16.msra.mxu0 %v744
    %994 = vmatprep.subr.bf16.mxu0 0
    %995 = vmatpush2.bf16.msra.mxu0 %v741
    %996 = vmatprep.subr.bf16.mxu0 0
    %997 = vmatpush2.bf16.msra.mxu0 %v738
    %998 = vmatprep.subr.bf16.mxu0 0
    %999 = vmatpush2.bf16.msra.mxu0 %v735
    %1000 = vmatprep.subr.bf16.mxu0 0
    %1001 = vmatpush2.bf16.msra.mxu0 %v732
    %1002 = vmatprep.subr.bf16.mxu0 0
    %1003 = vmatpush2.bf16.msra.mxu0 %v729
    %1004 = vmatprep.subr.bf16.mxu0 0
    %1005 = vmatpush2.bf16.msra.mxu0 %v726
    %1006 = vmatprep.mubr.bf16.mxu0 %v232
    %1007 = vmatmul.mubr.bf16.gmra.mxu0 %v231
    %v1008 = vpop.f32.mrf.mxu0
    %v1009 = vadd.f32 %v376, %v1008
    %v1010 = vpop.f32.mrf.mxu0
    %v1011 = vpop.f32.mrf.mxu0
    %v1012 = vpop.f32.mrf.mxu0
    %1013 = vdwg.mxu0
    %1014 = vmatprep.subr.bf16.mxu0 0
    %1015 = vmatpush1.bf16.msra.mxu0 %v771
    %1016 = vmatprep.subr.bf16.mxu0 0
    %1017 = vmatpush1.bf16.msra.mxu0 %v768
    %1018 = vmatprep.subr.bf16.mxu0 0
    %1019 = vmatpush1.bf16.msra.mxu0 %v765
    %1020 = vmatprep.subr.bf16.mxu0 0
    %1021 = vmatpush1.bf16.msra.mxu0 %v762
    %1022 = vmatprep.subr.bf16.mxu0 0
    %1023 = vmatpush1.bf16.msra.mxu0 %v759
    %1024 = vmatprep.subr.bf16.mxu0 0
    %1025 = vmatpush1.bf16.msra.mxu0 %v756
    %1026 = vmatprep.subr.bf16.mxu0 0
    %1027 = vmatpush1.bf16.msra.mxu0 %v753
    %1028 = vmatprep.subr.bf16.mxu0 0
    %1029 = vmatpush1.bf16.msra.mxu0 %v750
    %1030 = vmatprep.subr.bf16.mxu0 0
    %1031 = vmatpush2.bf16.msra.mxu0 %v795
    %1032 = vmatprep.subr.bf16.mxu0 0
    %1033 = vmatpush2.bf16.msra.mxu0 %v792
    %1034 = vmatprep.subr.bf16.mxu0 0
    %1035 = vmatpush2.bf16.msra.mxu0 %v789
    %1036 = vmatprep.subr.bf16.mxu0 0
    %1037 = vmatpush2.bf16.msra.mxu0 %v786
    %1038 = vmatprep.subr.bf16.mxu0 0
    %1039 = vmatpush2.bf16.msra.mxu0 %v783
    %1040 = vmatprep.subr.bf16.mxu0 0
    %1041 = vmatpush2.bf16.msra.mxu0 %v780
    %1042 = vmatprep.subr.bf16.mxu0 0
    %1043 = vmatpush2.bf16.msra.mxu0 %v777
    %1044 = vmatprep.subr.bf16.mxu0 0
    %1045 = vmatpush2.bf16.msra.mxu0 %v774
    %1046 = vmatprep.mubr.bf16.mxu0 %v234
    %1047 = vmatmul.mubr.bf16.gmra.mxu0 %v233
    %v1048 = vpop.f32.mrf.mxu0
    %v1049 = vadd.f32 %v1009, %v1048
    %v1050 = vpop.f32.mrf.mxu0
    %v1051 = vpop.f32.mrf.mxu0
    %v1052 = vpop.f32.mrf.mxu0
    %1053 = vdwg.mxu0
    %v1054 = vmax.f32 %v968, 0.0
    %v1055 = vmax.f32 %v970, 0.0
    %v1056 = vmax.f32 %v1049, 0.0
    %v1057 = vld [vmem:[%s5] sm:$0x7]
    %v1059 = vlaneseq
    %v1060 = vshrl.u32 %v1059, 7
    %v1061 = vsub.s32 0, %v1060
    %v1062 = vrot.slane %v1057, %v1061
    %v1063 = vlaneseq
    %v1064 = vshrl.u32 %v1063, 7
    %v1065 = vsub.s32 1, %v1064
    %v1066 = vrot.slane %v1057, %v1065
    %v1067 = vlaneseq
    %v1068 = vshrl.u32 %v1067, 7
    %v1069 = vsub.s32 2, %v1068
    %v1070 = vrot.slane %v1057, %v1069
    %v1074 = vmul.f32 %v1054, %v1062
    %v1075 = vmul.f32 %v1055, %v1066
    %v1076 = vmul.f32 %v1056, %v1070
    %v1077 = vadd.f32 %v1074, %v1075
    %v1078 = vadd.f32 %v1077, %v1076
    %1079 = vadd.xlane.f32.xlu0 %v1078
    %v1080 = vpop.xlane.xlu0 %1079
    %v1081 = vld [vmem:[#allocation2] sm:$0x1]
    %v1083 = vlaneseq
    %v1084 = vshrl.u32 %v1083, 7
    %v1085 = vsub.s32 0, %v1084
    %v1086 = vrot.slane %v1081, %v1085
    %v1088 = vadd.f32 %v1080, %v1086
    %v1089 = vtanh.pop %v1088
    %vm1090 = vcmask 7168
    %1091 = vst.msk [vmem:[%s7] sm:$0xff] %vm1090, %v1089
    // Predicated region
    $region38: #{ddpg_actor_forward.1} parent=1 // pred_check
      _
    $region39: #{ddpg_actor_forward.1} parent=1 // pred_check_branch
      %1093 = sbr.rel (0) target = $region41
    $region40: #{ddpg_actor_forward.1} parent=1 // pred_region
      _
    $region41: #{ddpg_actor_forward.1} parent=1 // pred_fallthru
      _
    // Predicated region
    $region42: #{ddpg_actor_forward.1} parent=1 // pred_check
      _
    $region43: #{ddpg_actor_forward.1} parent=1 // pred_check_branch
      %1095 = sbr.rel (0) target = $region45
    $region44: #{ddpg_actor_forward.1} parent=1 // pred_region
      _
    $region45: #{ddpg_actor_forward.1} parent=1 // pred_fallthru
      _
    %1096 = vsyncpa [#allocation4], 1
    %1097 = vsyncpa [#allocation6], 1

</llo_original>
